<compile_context>
chip_gen: v6e
topology: v6e:2x2x1
jax: 0.10.0
libtpu: 0.0.40
codegen_flags: <defaults>
</compile_context>

<pallas_src>
import functools
import math

import jax
import jax.numpy as jnp
from jax.experimental import pallas as pl
from jax.experimental.pallas import tpu as pltpu


_LANE = 128
_DEFAULT_COL_BLOCK = 256 * 1024            # max elements along the minor (lane) axis per slab
_VMEM_FALLBACK_BYTES = 64 * 1024 * 1024    # assume the smallest generation (v7x: 64 MiB / TC)
_VMEM_BUDGET_FRACTION = 0.6                # leave ~40% headroom for Mosaic scratch / pe buffers


def make_positional_encoding(max_len, n_features, dtype=jnp.float32):
    """Sinusoidal table identical to the PyTorch buffer `pe[0, 0]`, shape (max_len, F)."""
    position = jnp.arange(max_len, dtype=jnp.float32)[:, None]                  # (L, 1)
    div_term = jnp.exp(jnp.arange(0, n_features, 2, dtype=jnp.float32)
                       * (-math.log(10000.0) / n_features))                     # (F/2,)
    ang = position * div_term                                                   # (L, F/2)
    # interleave [sin0, cos0, sin1, cos1, ...] == pe[..., 0::2]=sin, pe[..., 1::2]=cos
    pe = jnp.stack([jnp.sin(ang), jnp.cos(ang)], axis=-1).reshape(max_len, n_features)
    return pe.astype(dtype)


# ------------------------------- kernels ------------------------------------


def _pe_add_kernel(x_ref, pe_ref, o_ref):
    """Eval mode: out = x + pe  (pe broadcast over the row/sublane axis)."""
    o_ref[...] = (x_ref[...] + pe_ref[...]).astype(o_ref.dtype)


def _pe_add_dropout_kernel(x_ref, pe_ref, bits_ref, o_ref, *, threshold, scale):
    """Training mode: out = dropout(x + pe) using a precomputed uint8 mask stream."""
    val = x_ref[...] + pe_ref[...]
    keep = bits_ref[...] >= jnp.uint8(threshold)          # P(drop) == threshold / 256
    o_ref[...] = jnp.where(keep, val * scale, jnp.zeros_like(val)).astype(o_ref.dtype)


# ------------------------------ tiling helpers -------------------------------


def _sublane_multiple(dtype):
    """Packed sublane count per dtype: 8 for 4-byte, 16 for 2-byte, 32 for 1-byte."""
    return max(8, 32 // jnp.dtype(dtype).itemsize)


def _vmem_capacity_bytes():
    """Generation-aware VMEM size; conservative fallback (v7x) if not queryable."""
    try:
        return int(pltpu.get_tpu_info().vmem_capacity_bytes)
    except Exception:
        return _VMEM_FALLBACK_BYTES


def _choose_col_block(M, col_block):
    if col_block is None:
        col_block = _DEFAULT_COL_BLOCK
    col_block = int(min(M, col_block))
    if col_block >= M or M <= _LANE:
        return M                                           # full minor axis (always legal)
    return max(_LANE, (col_block // _LANE) * _LANE)        # multiple of 128 lanes


def _choose_row_block(N, requested, sublane):
    requested = int(min(N, max(1, requested)))
    if requested >= N:
        return N                                           # full major axis (always legal)
    return max(8, (requested // sublane) * sublane)        # dtype-aware sublane rounding


# --------------------------------- wrapper -----------------------------------


def positional_encoding_pallas(x, pe, *, dropout_p=0.1, training=False, seed=0,
                               row_block=None, col_block=None, donate_x=False):
    """
    Args:
      x:  (B, H, S, F) — n_batch, n_heads, n_sequence, n_features
      pe: (max_len, F) sinusoidal table (see make_positional_encoding)
    Returns:
      (B, H, S, F): dropout(x + pe[:S])   (dropout active only when training=True)
    """
    B, H, S, F = x.shape
    if pe.shape[0] < S or pe.shape[1] != F:
        raise ValueError("pe table too small for input")
    dropout_p = float(dropout_p)
    if training and dropout_p >= 1.0:
        raise ValueError("dropout_p must be < 1.0 in training mode")
    use_dropout = bool(training) and dropout_p > 0.0

    N, M = B * H, S * F
    # Lane-dense layout: collapse (S, F) into one minor axis so stores are full-width
    # vst, and collapse (B, H) into one major axis.
    x2 = x.reshape(N, M)
    pe2 = pe[:S].astype(x.dtype).reshape(1, M)

    itemsize = jnp.dtype(x.dtype).itemsize
    sublane = _sublane_multiple(x.dtype)

    # --- block sizing: fill ~60% of this generation's VMEM with the double-buffered
    #     x/out(/mask) blocks; the bigger the block, the better the per-step
    #     pipeline-overhead amortization (largest win on v7x).
    vmem_cap = _vmem_capacity_bytes()
    budget = int(vmem_cap * _VMEM_BUDGET_FRACTION)
    bits_itemsize = 1 if use_dropout else 0
    per_elem_resident = 2 * (2 * itemsize + bits_itemsize)   # 2 bufs x (in + out [+ mask])

    cb = _choose_col_block(M, col_block)
    auto_rb = budget // max(1, cb * per_elem_resident)
    rb = _choose_row_block(N, row_block if row_block is not None else auto_rb, sublane)

    # --- VMEM limit derived from the actual footprint (+~30% margin), capped at physical.
    block_bytes = rb * cb * (2 * itemsize + bits_itemsize)    # one in + one out (+ mask) buffer
    footprint = 2 * block_bytes + 2 * cb * itemsize           # double-buffered + pe slab
    vmem_limit = int(min(vmem_cap, max(int(footprint * 1.3), 4 * 1024 * 1024)))

    n_cols = pl.cdiv(M, cb)
    n_rows = pl.cdiv(N, rb)

    if n_cols == 1:
        # Whole S*F fits one column block: rows-outer 1-D grid so the megacore-sharded
        # axis has real extent (v7x has 2 TensorCores).
        grid = (n_rows,)
        dims = ("parallel",)
        xmap = lambda r: (r, 0)
        pemap = lambda r: (0, 0)
    else:
        # Columns OUTER, rows INNER: pe's block index depends only on the outer axis,
        # so it is revisited (fetched once) across all consecutive row steps.
        grid = (n_cols, n_rows)
        dims = ("parallel", "parallel")
        xmap = lambda c, r: (r, c)
        pemap = lambda c, r: (0, c)

    x_spec = pl.BlockSpec((rb, cb), xmap)
    pe_spec = pl.BlockSpec((1, cb), pemap)
    out_spec = pl.BlockSpec((rb, cb), xmap)

    if use_dropout:
        # Portable dropout mask: 1 random byte per element generated outside the kernel
        # (no pltpu.prng_* -> also runs under interpret mode). Keep-probability is
        # quantized to 1/256 (error < 1/512 vs. the requested p); kept elements are
        # scaled by 1/(1-p) exactly as nn.Dropout does.
        # TODO(synk): no bitwise parity with PyTorch's dropout RNG (mask realization differs).
        threshold = min(255, int(round(dropout_p * 256.0)))
        scale = 1.0 / (1.0 - dropout_p)
        bits2 = jax.random.bits(jax.random.PRNGKey(int(seed)), (N, M), dtype=jnp.uint8)
        kernel = functools.partial(_pe_add_dropout_kernel, threshold=threshold, scale=scale)
        in_specs = [x_spec, pe_spec, pl.BlockSpec((rb, cb), xmap)]
        operands = (x2, pe2, bits2)
    else:
        kernel = _pe_add_kernel
        in_specs = [x_spec, pe_spec]
        operands = (x2, pe2)

    bytes_accessed = 2 * N * M * itemsize + M * itemsize + (N * M if use_dropout else 0)
    cost = pl.CostEstimate(flops=N * M, transcendentals=0, bytes_accessed=int(bytes_accessed))

    out2 = pl.pallas_call(
        kernel,
        out_shape=jax.ShapeDtypeStruct((N, M), x.dtype),
        grid_spec=pltpu.PrefetchScalarGridSpec(
            num_scalar_prefetch=0,
            grid=grid,
            in_specs=in_specs,
            out_specs=out_spec,
        ),
        compiler_params=pltpu.CompilerParams(
            dimension_semantics=dims,          # elementwise: shard across TCs on v7x
            vmem_limit_bytes=vmem_limit,
        ),
        cost_estimate=cost,
        # x2 is input index 0; alias it to the output only if the caller donates x.
        input_output_aliases=({0: 0} if donate_x else {}),
    )(*operands)

    return out2.reshape(B, H, S, F)


def positional_encoding_reference(x, pe):
    """Plain-JAX reference of the PyTorch forward (eval mode: dropout = identity)."""
    S = x.shape[2]
    return x + pe[None, None, :S, :].astype(x.dtype)


if __name__ == "__main__":
    B, H, S, F = 2, 8, 16, 32          # (n_batch, n_heads, n_sequence, n_features)
    MAX_LEN = 64

    key = jax.random.PRNGKey(0)
    x = jax.random.normal(key, (B, H, S, F), dtype=jnp.float32)
    pe = make_positional_encoding(MAX_LEN, F)

    ref = positional_encoding_reference(x, pe)

    # 1) eval mode (dropout inactive), explicit small tiles -> exercises the
    #    multi-block (cols-outer, rows-inner) grid path.
    out = positional_encoding_pallas(x, pe, dropout_p=0.1, training=False,
                                     row_block=8, col_block=256)
    jax.block_until_ready(out)
    assert out.shape == x.shape
    assert jnp.allclose(out, ref, atol=1e-6, rtol=1e-6), "eval-mode mismatch vs reference"

    # 2) eval mode with auto-chosen (VMEM-sized) tiles -> exercises the rows-outer 1-D grid.
    out_auto = positional_encoding_pallas(x, pe, training=False)
    jax.block_until_ready(out_auto)
    assert jnp.allclose(out_auto, ref, atol=1e-6, rtol=1e-6), "auto-tile mismatch vs reference"

    # 3) training mode: dropout via a precomputed uint8 mask stream (mask realization is
    #    implementation-specific, so only statistical / scaling checks).
    p = 0.1
    out_d = positional_encoding_pallas(x, pe, dropout_p=p, training=True, seed=1234)
    jax.block_until_ready(out_d)
    assert bool(jnp.all(jnp.isfinite(out_d)))
    zero_frac = float(jnp.mean(out_d == 0.0))
    assert 0.01 <= zero_frac <= 0.30, f"unexpected dropout zero-fraction {zero_frac}"
    nz = out_d != 0.0
    assert jnp.allclose(jnp.where(nz, out_d * (1.0 - p), 0.0),
                        jnp.where(nz, ref, 0.0), atol=1e-5, rtol=1e-5), \
        "kept elements not scaled by 1/(1-p)"

    print("KERNEL_OK")
</pallas_src>

<mosaic_0001>
module attributes {stable_mosaic.version = 11 : i64} {
  func.func @_pe_add_kernel(%arg0: i32, %arg1: i32, %arg2: memref<8x256xf32, #tpu.memory_space<vmem>>, %arg3: memref<1x256xf32, #tpu.memory_space<vmem>>, %arg4: memref<8x256xf32, #tpu.memory_space<vmem>>) attributes {dimension_semantics = [#tpu.dimension_semantics<parallel>, #tpu.dimension_semantics<parallel>], iteration_bounds = array<i64: 2, 2>, scalar_prefetch = 0 : i64, scratch_operands = 0 : i64, tpu.core_type = #tpu.core_type<tc>, window_params = [{transform_indices = @transform_0, window_bounds = array<i64: 8, 256>}, {transform_indices = @transform_1, window_bounds = array<i64: 1, 256>}, {transform_indices = @transform_2, window_bounds = array<i64: 8, 256>}]} {
    %c0 = arith.constant 0 : index
    %c0_0 = arith.constant 0 : index
    %0 = vector.load %arg2[%c0, %c0_0] : memref<8x256xf32, #tpu.memory_space<vmem>>, vector<8x256xf32>
    %c0_1 = arith.constant 0 : index
    %c0_2 = arith.constant 0 : index
    %1 = vector.load %arg3[%c0_1, %c0_2] : memref<1x256xf32, #tpu.memory_space<vmem>>, vector<1x256xf32>
    %2 = vector.broadcast %1 : vector<1x256xf32> to vector<8x256xf32>
    %3 = arith.addf %0, %2 : vector<8x256xf32>
    %c0_3 = arith.constant 0 : index
    %c0_4 = arith.constant 0 : index
    %4 = vector.load %arg4[%c0_3, %c0_4] : memref<8x256xf32, #tpu.memory_space<vmem>>, vector<8x256xf32>
    tpu.vector_store %arg4[%c0_3, %c0_4], %3 {strides = array<i32>} : memref<8x256xf32, #tpu.memory_space<vmem>>, vector<8x256xf32>,
    return
  }
  func.func @transform_0(%arg0: i32, %arg1: i32) -> (i32, i32) {
    %c0_i32 = arith.constant 0 : i32
    return %arg1, %arg0 : i32, i32
  }
  func.func @transform_1(%arg0: i32, %arg1: i32) -> (i32, i32) {
    %c0_i32 = arith.constant 0 : i32
    %c0_i32_0 = arith.constant 0 : i32
    return %c0_i32, %arg0 : i32, i32
  }
  func.func @transform_2(%arg0: i32, %arg1: i32) -> (i32, i32) {
    %c0_i32 = arith.constant 0 : i32
    return %arg1, %arg0 : i32, i32
  }
}

</mosaic_0001>

<llo_original>
// kernel: tpu_custom_call.1
$region0: #{tpu_custom_call.1}
  #allocation0 [shape = 'u32[]', space=smem, size = 0x4, offset = 0x4, fixed_abs, tag = 'smem constant byte address 0x4 - core index']
  #allocation1 [shape = 'u32[144,128]{1,0:T(1,128)}', space=vmem, size = 0x12000, scoped, tag = 'internal scratch']
  %s0 = inlined_call_operand.hbm [shape: f32[16,512], index: 0, kind: input, shape index: {}]
  %s1 = inlined_call_operand.hbm [shape: f32[1,512], index: 1, kind: input, shape index: {}]
  %s2 = inlined_call_operand.hbm [shape: f32[16,512], index: 2, kind: output, shape index: {}]
  %s3 = sld [smem:[#allocation0]]
  $region49: #{tpu_custom_call.1} parent=0
    _
  %s5 = ssub.s32 1, %s3
  %s6 = scalar_select 0, %s5, %s3
  $region1: #{tpu_custom_call.1} parent=0
    #allocation2 [shape = 'u8[16384]{0}', space=vmem, size = 0x4000, scoped, tag = 'input window, operand 0']
    #allocation3 [shape = 's32[2]{0}', space=sflag, size = 0x8, scoped, tag = 'scoped memory for tpu_custom_call.1']
    #allocation4 [shape = 's32[2]{0}', space=sflag, size = 0x8, scoped, tag = 'scoped memory for tpu_custom_call.1']
    #allocation5 [shape = 'u8[2048]{0}', space=vmem, size = 0x800, scoped, tag = 'input window, operand 1']
    #allocation6 [shape = 's32[2]{0}', space=sflag, size = 0x8, scoped, tag = 'scoped memory for tpu_custom_call.1']
    #allocation7 [shape = 'u8[16384]{0}', space=vmem, size = 0x4000, scoped, tag = 'output window, operand 0']
    %7 = vsyncpa [#allocation3], 0
    %s8 = scalar_lea.sflag [#allocation3], 1
    %9 = vsyncpa %s8, 0
    %10 = vsyncpa [#allocation6], 0
    %s11 = scalar_lea.sflag [#allocation6], 1
    %12 = vsyncpa %s11, 0
    %13 = vsyncpa [#allocation4], 0
    %s14 = scalar_lea.sflag [#allocation4], 1
    %15 = vsyncpa %s14, 0
    loop: start=0, step=1, limit=6
    $region2: #{tpu_custom_call.1} parent=1 // loop_pre_header
      _
    $region3: #{tpu_custom_call.1} parent=1 // loop_header
      %s17 = sphi 0, %s21
      %p18 = scmp.ge.s32.totalorder %s17, 6
      %s24 = sphi 0, %s36
      %s25 = sphi 0, %s32
      %s26 = sphi 0, %s24
      %s27 = sphi 0, %s25
      %s28 = sphi 0, %s26
      %s29 = sphi 0, %s27
      %s41 = sphi 0, %s43
      %s44 = sphi 0, %s41
      %s45 = sphi 0, %s44
      %s61 = sphi 0, %s45
      %s67 = sphi 0, %s69
      %s70 = sphi 0, %s67
      %s71 = sphi 0, %s70
      %s87 = sphi 0, %s71
      %s95 = sphi 0, %s97
      %s98 = sphi 0, %s95
      %s99 = sphi 0, %s98
      %s115 = sphi 0, %s99
    $region4: #{tpu_custom_call.1} parent=1 // loop_header_branch
      %20 = sbr.rel (%p18) target = $region8
    $region5: #{tpu_custom_call.1} parent=1 // loop_body
      %s22 = ssub.s32 %s17, 1
      %s23 = ssub.s32 %s17, 2
      %s30 = sadd.s32 1, %s25
      %p31 = scmp.ge.s32.totalorder %s30, 2
      %s32 = scalar_select %p31, 0, %s30
      %s33 = sadd.s32 1, %s24
      %s34 = scalar_select %p31, %s33, %s24
      %p35 = scmp.ge.s32.totalorder %s34, 2
      %s36 = scalar_select %p35, 0, %s34
      %s37 = ssub.s32 %s25, %s32
      %s38 = ssub.s32 %s24, %s36
      %s39 = sor.u32 %s37, %s38
      %p40 = scmp.eq.s32.totalorder %s39, 0
      %s42 = sadd.s32 %s41, 1
      %s43 = scalar_select %p40, %s41, %s42
      %p46 = pneg %p40
      %p47 = scmp.eq.s32.totalorder %s17, 3
      %p48 = por %p46, %p47
      %p49 = scmp.ne.s32.totalorder %s41, %s44
      %p50 = scmp.eq.s32.totalorder %s17, 0
      %p51 = por %p49, %p50
      %p52 = scmp.ne.s32.totalorder %s41, %s44
      %p53 = scmp.eq.s32.totalorder %s22, 3
      %p54 = por %p52, %p53
      %p55 = scmp.ne.s32.totalorder %s44, %s45
      %p56 = scmp.eq.s32.totalorder %s22, 0
      %p57 = por %p55, %p56
      %p58 = scmp.ne.s32.totalorder %s44, %s45
      %p59 = scmp.eq.s32.totalorder %s23, 3
      %p60 = por %p58, %p59
      %p62 = scmp.ne.s32.totalorder %s45, %s61
      %p63 = scmp.eq.s32.totalorder %s23, 0
      %p64 = por %p62, %p63
      %s65 = ssub.s32 %s24, %s36
      %p66 = scmp.eq.s32.totalorder %s65, 0
      %s68 = sadd.s32 %s67, 1
      %s69 = scalar_select %p66, %s67, %s68
      %p72 = pneg %p66
      %p73 = scmp.eq.s32.totalorder %s17, 3
      %p74 = por %p72, %p73
      %p75 = scmp.ne.s32.totalorder %s67, %s70
      %p76 = scmp.eq.s32.totalorder %s17, 0
      %p77 = por %p75, %p76
      %p78 = scmp.ne.s32.totalorder %s67, %s70
      %p79 = scmp.eq.s32.totalorder %s22, 3
      %p80 = por %p78, %p79
      %p81 = scmp.ne.s32.totalorder %s70, %s71
      %p82 = scmp.eq.s32.totalorder %s22, 0
      %p83 = por %p81, %p82
      %p84 = scmp.ne.s32.totalorder %s70, %s71
      %p85 = scmp.eq.s32.totalorder %s23, 3
      %p86 = por %p84, %p85
      %p88 = scmp.ne.s32.totalorder %s71, %s87
      %p89 = scmp.eq.s32.totalorder %s23, 0
      %p90 = por %p88, %p89
      %s91 = ssub.s32 %s25, %s32
      %s92 = ssub.s32 %s24, %s36
      %s93 = sor.u32 %s91, %s92
      %p94 = scmp.eq.s32.totalorder %s93, 0
      %s96 = sadd.s32 %s95, 1
      %s97 = scalar_select %p94, %s95, %s96
      %p100 = pneg %p94
      %p101 = scmp.eq.s32.totalorder %s17, 3
      %p102 = por %p100, %p101
      %p103 = scmp.ne.s32.totalorder %s95, %s98
      %p104 = scmp.eq.s32.totalorder %s17, 0
      %p105 = por %p103, %p104
      %p106 = scmp.ne.s32.totalorder %s95, %s98
      %p107 = scmp.eq.s32.totalorder %s22, 3
      %p108 = por %p106, %p107
      %p109 = scmp.ne.s32.totalorder %s98, %s99
      %p110 = scmp.eq.s32.totalorder %s22, 0
      %p111 = por %p109, %p110
      %p112 = scmp.ne.s32.totalorder %s98, %s99
      %p113 = scmp.eq.s32.totalorder %s23, 3
      %p114 = por %p112, %p113
      %p116 = scmp.ne.s32.totalorder %s99, %s115
      %p117 = scmp.eq.s32.totalorder %s23, 0
      %p118 = por %p116, %p117
      %p119 = scmp.le.s32.totalorder 1, %s17
      %p120 = scmp.lt.s32.totalorder %s17, 5
      %p121 = pnand %p119, %p120
      %p122 = pneg %p121
      // Predicated region
      $region9: #{tpu_custom_call.1} parent=5 // pred_check
        _
      $region10: #{tpu_custom_call.1} parent=5 // pred_check_branch
        %124 = sbr.rel (%p121) target = $region12
      $region11: #{tpu_custom_call.1} parent=5 // pred_region
        %s125 = ssub.s32 %s17, 1
      $region12: #{tpu_custom_call.1} parent=5 // pred_fallthru
        _
      %p126 = scmp.lt.s32.totalorder %s17, 4
      // Predicated region
      $region13: #{tpu_custom_call.1} parent=5 // pred_check
        %p127 = pneg %p126
      $region14: #{tpu_custom_call.1} parent=5 // pred_check_branch
        %129 = sbr.rel (%p127) target = $region16
      $region15: #{tpu_custom_call.1} parent=5 // pred_region
        // Predicated region
        $region17: #{tpu_custom_call.1} parent=15 // pred_check
          %p130 = pneg %p51
        $region18: #{tpu_custom_call.1} parent=15 // pred_check_branch
          %132 = sbr.rel (%p130) target = $region20
        $region19: #{tpu_custom_call.1} parent=15 // pred_region
          %s133 = sand.u32 %s41, 1
          %s134 = scalar_lea.sflag [#allocation3], %s133
          %s135 = sand.u32 %s41, 1
          %s136 = smul.addr %s135, 16
          %s137 = scalar_lea.vmem [#allocation2], %s136
          %s138 = smul.u32 2, %s24
          %s140 = ssub.s32 256, 256
          %141 = vsyncadd %s134, %s140
          %s142 = smul.addr %s25, 4
          %s143 = sadd.s32 %s138, %s142
          %s144 = smul.addr %s143, 128
          %s145 = scalar_lea.hbm %s0, %s144
          %s147 = sshll.u32 %s137, 4
          %s148 = int_to_ptr.vmem [resolvable:$true] %s147
          %150 = dma.hbm_to_vmem [thread:$0]  %s145, 256, %s148, %s134
        $region20: #{tpu_custom_call.1} parent=15 // pred_fallthru
          _
        // Predicated region
        $region21: #{tpu_custom_call.1} parent=15 // pred_check
          %p151 = pneg %p77
        $region22: #{tpu_custom_call.1} parent=15 // pred_check_branch
          %153 = sbr.rel (%p151) target = $region24
        $region23: #{tpu_custom_call.1} parent=15 // pred_region
          %s154 = sand.u32 %s67, 1
          %s155 = scalar_lea.sflag [#allocation6], %s154
          %s156 = sand.u32 %s67, 1
          %s157 = smul.addr %s156, 2
          %s158 = scalar_lea.vmem [#allocation5], %s157
          %s159 = smul.u32 2, %s24
          %s161 = ssub.s32 32, 32
          %162 = vsyncadd %s155, %s161
          %s163 = smul.addr %s159, 16
          %s164 = scalar_lea.hbm %s1, %s163
          %s166 = sshll.u32 %s158, 4
          %s167 = int_to_ptr.vmem [resolvable:$true] %s166
          %169 = dma.hbm_to_vmem [thread:$0]  %s164, 32, %s167, %s155
        $region24: #{tpu_custom_call.1} parent=15 // pred_fallthru
          _
      $region16: #{tpu_custom_call.1} parent=5 // pred_fallthru
        _
      %p170 = scmp.le.s32.totalorder 1, %s17
      %p171 = scmp.lt.s32.totalorder %s17, 5
      %p172 = pnand %p170, %p171
      %p173 = pneg %p172
      // Predicated region
      $region25: #{tpu_custom_call.1} parent=5 // pred_check
        _
      $region26: #{tpu_custom_call.1} parent=5 // pred_check_branch
        %175 = sbr.rel (%p172) target = $region28
      $region27: #{tpu_custom_call.1} parent=5 // pred_region
        %s176 = ssub.s32 %s17, 1
        %s177 = sand.u32 %s44, 1
        %s178 = scalar_lea.sflag [#allocation3], %s177
        %s179 = sand.u32 %s44, 1
        %s180 = smul.addr %s179, 16
        %s181 = scalar_lea.vmem [#allocation2], %s180
        // Predicated region
        $region29: #{tpu_custom_call.1} parent=27 // pred_check
          %p182 = pneg %p57
        $region30: #{tpu_custom_call.1} parent=27 // pred_check_branch
          %184 = sbr.rel (%p182) target = $region32
        $region31: #{tpu_custom_call.1} parent=27 // pred_region
          %185 = dma.done %s178, 256
        $region32: #{tpu_custom_call.1} parent=27 // pred_fallthru
          _
        %s186 = sand.u32 %s70, 1
        %s187 = scalar_lea.sflag [#allocation6], %s186
        %s188 = sand.u32 %s70, 1
        %s189 = smul.addr %s188, 2
        %s190 = scalar_lea.vmem [#allocation5], %s189
        // Predicated region
        $region33: #{tpu_custom_call.1} parent=27 // pred_check
          %p191 = pneg %p83
        $region34: #{tpu_custom_call.1} parent=27 // pred_check_branch
          %193 = sbr.rel (%p191) target = $region36
        $region35: #{tpu_custom_call.1} parent=27 // pred_region
          %194 = dma.done %s187, 32
        $region36: #{tpu_custom_call.1} parent=27 // pred_fallthru
          _
        %s195 = sand.u32 %s44, 1
        %s196 = scalar_lea.sflag [#allocation3], %s195
        %s197 = sand.u32 %s44, 1
        %s198 = smul.addr %s197, 16
        %s199 = scalar_lea.vmem [#allocation2], %s198
        %p200 = pneg %p57
        %p201 = pneg %p54
        %s202 = sand.u32 %s70, 1
        %s203 = scalar_lea.sflag [#allocation6], %s202
        %s204 = sand.u32 %s70, 1
        %s205 = smul.addr %s204, 2
        %s206 = scalar_lea.vmem [#allocation5], %s205
        %p207 = pneg %p83
        %p208 = pneg %p80
        %p209 = pneg %p111
        %p210 = pneg %p108
        %s211 = sand.u32 %s98, 1
        %s212 = scalar_lea.sflag [#allocation4], %s211
        %s213 = sand.u32 %s98, 1
        %s214 = smul.addr %s213, 16
        %s215 = scalar_lea.vmem [#allocation7], %s214
        %s216 = smul.u32 2, %s26
        %s217 = smul.u32 2, %s26
        %s218 = smul.u32 2, %s26
        %v219 = vld [vmem:[%s181] sm:$0xff]
        %v220 = vld [vmem:[%s181 + $0x8] sm:$0xff]
        %v221 = vld [vmem:[%s190] sm:$0x3]
        %v223 = vlaneseq
        %v224 = vshrl.u32 %v223, 7
        %v225 = vsub.s32 0, %v224
        %v226 = vrot.slane %v221, %v225
        %v227 = vlaneseq
        %v228 = vshrl.u32 %v227, 7
        %v229 = vsub.s32 1, %v228
        %v230 = vrot.slane %v221, %v229
        %v233 = vadd.f32 %v219, %v226
        %v234 = vadd.f32 %v220, %v230
        %235 = vst [vmem:[%s215] sm:$0xff] %v233
        %236 = vst [vmem:[%s215 + $0x8] sm:$0xff] %v234
        %s237 = sand.u32 %s98, 1
        %s238 = scalar_lea.sflag [#allocation4], %s237
        %s239 = sand.u32 %s98, 1
        %s240 = smul.addr %s239, 16
        %s241 = scalar_lea.vmem [#allocation7], %s240
        // Predicated region
        $region37: #{tpu_custom_call.1} parent=27 // pred_check
          %p242 = pneg %p108
        $region38: #{tpu_custom_call.1} parent=27 // pred_check_branch
          %244 = sbr.rel (%p242) target = $region40
        $region39: #{tpu_custom_call.1} parent=27 // pred_region
          %s245 = smul.u32 2, %s26
          %s247 = ssub.s32 256, 256
          %248 = vsyncadd %s238, %s247
          %s249 = smul.addr %s27, 4
          %s250 = sadd.s32 %s245, %s249
          %s251 = smul.addr %s250, 128
          %s252 = scalar_lea.hbm %s2, %s251
          %s254 = sshll.u32 %s241, 4
          %s255 = int_to_ptr.vmem [resolvable:$true] %s254
          %257 = dma.vmem_to_hbm [thread:$0]  %s255, 256, %s252, %s238
        $region40: #{tpu_custom_call.1} parent=27 // pred_fallthru
          _
      $region28: #{tpu_custom_call.1} parent=5 // pred_fallthru
        _
      %p258 = scmp.le.s32.totalorder 2, %s17
      // Predicated region
      $region41: #{tpu_custom_call.1} parent=5 // pred_check
        %p259 = pneg %p258
      $region42: #{tpu_custom_call.1} parent=5 // pred_check_branch
        %261 = sbr.rel (%p259) target = $region44
      $region43: #{tpu_custom_call.1} parent=5 // pred_region
        %s262 = ssub.s32 %s17, 2
        // Predicated region
        $region45: #{tpu_custom_call.1} parent=43 // pred_check
          %p263 = pneg %p114
        $region46: #{tpu_custom_call.1} parent=43 // pred_check_branch
          %265 = sbr.rel (%p263) target = $region48
        $region47: #{tpu_custom_call.1} parent=43 // pred_region
          %s266 = sand.u32 %s99, 1
          %s267 = scalar_lea.sflag [#allocation4], %s266
          %s268 = sand.u32 %s99, 1
          %s269 = smul.addr %s268, 16
          %s270 = scalar_lea.vmem [#allocation7], %s269
          %271 = dma.done %s267, 256
        $region48: #{tpu_custom_call.1} parent=43 // pred_fallthru
          _
      $region44: #{tpu_custom_call.1} parent=5 // pred_fallthru
        _
    $region6: #{tpu_custom_call.1} parent=1 // loop_footer
      %s21 = sadd.s32 1, %s17
    $region7: #{tpu_custom_call.1} parent=1 // loop_footer_branch
      %16 = sbr.rel target = $region3
    $region8: #{tpu_custom_call.1} parent=1 // loop_exit
      _
    %272 = vsyncpa [#allocation3], 1
    %s273 = scalar_lea.sflag [#allocation3], 1
    %274 = vsyncpa %s273, 1
    %275 = vsyncpa [#allocation6], 1
    %s276 = scalar_lea.sflag [#allocation6], 1
    %277 = vsyncpa %s276, 1
    %278 = vsyncpa [#allocation4], 1
    %s279 = scalar_lea.sflag [#allocation4], 1
    %280 = vsyncpa %s279, 1

</llo_original>
